<compile_context>
chip_gen: v7x
topology: tpu7x:2x2x1
jax: 0.10.0
libtpu: 0.0.40
codegen_flags: <defaults>
</compile_context>

<pallas_src>
import jax
import jax.numpy as jnp
from jax.experimental import pallas as pl
from jax.experimental.pallas import tpu as pltpu


def _critic_kernel(obs_ref, act_ref, w1o_ref, w1a_ref, b1_ref,
                   w2_ref, b2_ref, w3_ref, b3_ref, o_ref):
    # Layer 1: split matmul replaces cat([inputs, actions]) @ W1.
    # bf16 MXU operands, f32 accumulation.
    obs = obs_ref[...].astype(jnp.bfloat16)
    act = act_ref[...].astype(jnp.bfloat16)
    h1 = (jnp.dot(obs, w1o_ref[...], preferred_element_type=jnp.float32)
          + jnp.dot(act, w1a_ref[...], preferred_element_type=jnp.float32)
          + b1_ref[...])
    h1 = jnp.maximum(h1, 0.0)                           # ReLU (f32 on the VPU)

    # Layer 2.
    h2 = jnp.dot(h1.astype(jnp.bfloat16), w2_ref[...],
                 preferred_element_type=jnp.float32) + b2_ref[...]
    h2 = jnp.maximum(h2, 0.0)                           # ReLU

    # Layer 3: q = h2 @ w3 + b3, done as broadcast-multiply + lane reduction
    # (no MXU N=1 pass, no h2 transpose).  w3_ref is a (1, Hp) f32 row.
    q = jnp.sum(h2 * w3_ref[...], axis=-1, keepdims=True) + b3_ref[0, 0]
    o_ref[...] = q.astype(o_ref.dtype)


def _choose_batch_tile(B, max_tile):
    """Pick (TB, B_pad) such that:
      * no wrapper-side padding of the inputs is needed whenever possible,
      * TB is a multiple of 8 (sublane rule) or equal to the full batch,
      * large batches get an even number (>=2) of grid steps so both v7x
        TensorCores get balanced work.
    """
    max_tile = max(8, (max_tile // 8) * 8)
    if B <= max_tile:
        # Split large-but-fitting batches into two tiles for v7x megacore.
        if B >= 1024 and B % 16 == 0:
            return B // 2, B
        return B, B
    # B > max_tile: prefer a divisor of B (multiple of 8) -> no padding;
    # among divisors prefer an even step count.
    best = None
    for tb in range(max_tile, 7, -8):
        if B % tb == 0:
            if (B // tb) % 2 == 0:
                return tb, B
            if best is None:
                best = tb
    if best is not None:
        return best, B
    # Rare fallback (e.g. huge prime B): pad the batch.
    return max_tile, pl.cdiv(B, max_tile) * max_tile


def critic_forward(inputs, actions, params, *, batch_tile=2048):
    """Pallas implementation of Critic.forward.

    inputs:  (B, num_inputs)  float32
    actions: (B, num_actions) float32
    params:  output of prepare_params() (lane-padded, W1 split, bf16 weights)
    returns: (B, 1) float32
    """
    B, num_inputs = inputs.shape
    _, num_actions = actions.shape
    Hp = params["w1_obs"].shape[1]                 # padded hidden width (x128)

    TB, B_pad = _choose_batch_tile(B, batch_tile)
    if B_pad != B:
        pad = B_pad - B
        inputs = jnp.pad(inputs, ((0, pad), (0, 0)))
        actions = jnp.pad(actions, ((0, pad), (0, 0)))
    grid = (B_pad // TB,)

    row = lambda i: (i, 0)     # batch-tiled operands
    const = lambda i: (0, 0)   # weights/biases: same block every step -> VMEM-resident

    # Scoped-VMEM budget from the lane-padded tile size (each narrow (TB, <=128)
    # f32 block occupies TB*128*4 bytes in VMEM).  Clamp well below v7x's
    # 64 MiB physical VMEM.
    tile_block_bytes = TB * 128 * 4
    vmem_limit = int(min(48 << 20, max(16 << 20, 12 * tile_block_bytes + (4 << 20))))

    cost = pl.CostEstimate(
        flops=2 * B_pad * Hp * (num_inputs + num_actions + Hp + 1),
        transcendentals=0,
        bytes_accessed=(B_pad * (num_inputs + num_actions + 1) * 4
                        + ((num_inputs + num_actions) * Hp + Hp * Hp) * 2
                        + 3 * Hp * 4 + 4),
    )

    out = pl.pallas_call(
        _critic_kernel,
        out_shape=jax.ShapeDtypeStruct((B_pad, 1), jnp.float32),
        grid=grid,
        in_specs=[
            pl.BlockSpec((TB, num_inputs), row),            # inputs
            pl.BlockSpec((TB, num_actions), row),           # actions
            pl.BlockSpec((num_inputs, Hp), const),          # w1_obs (bf16)
            pl.BlockSpec((num_actions, Hp), const),         # w1_act (bf16)
            pl.BlockSpec((1, Hp), const),                   # b1 (f32)
            pl.BlockSpec((Hp, Hp), const),                  # w2 (bf16)
            pl.BlockSpec((1, Hp), const),                   # b2 (f32)
            pl.BlockSpec((1, Hp), const),                   # w3 row (f32)
            pl.BlockSpec(memory_space=pltpu.MemorySpace.SMEM),  # b3 scalar
        ],
        out_specs=pl.BlockSpec((TB, 1), row),
        compiler_params=pltpu.CompilerParams(
            dimension_semantics=("parallel",),
            vmem_limit_bytes=vmem_limit),
        cost_estimate=cost,
    )(inputs, actions,
      params["w1_obs"], params["w1_act"], params["b1"],
      params["w2"], params["b2"], params["w3_row"], params["b3"])

    return out[:B]


def init_params(key, num_inputs, num_actions, hidden):
    """PyTorch nn.Linear-style init; weights stored as (in, out) so x @ W."""
    D = num_inputs + num_actions
    ks = jax.random.split(key, 6)

    def lin(kw, kb, fan_in, fan_out):
        bound = 1.0 / (fan_in ** 0.5)
        w = jax.random.uniform(kw, (fan_in, fan_out), jnp.float32, -bound, bound)
        b = jax.random.uniform(kb, (1, fan_out), jnp.float32, -bound, bound)
        return w, b

    w1, b1 = lin(ks[0], ks[1], D, hidden)
    w2, b2 = lin(ks[2], ks[3], hidden, hidden)
    w3, b3 = lin(ks[4], ks[5], hidden, 1)
    return dict(w1=w1, b1=b1, w2=w2, b2=b2, w3=w3, b3=b3)


def prepare_params(params, num_inputs, num_actions, lane=128):
    """One-time (outside the hot path) relayout for the kernel:
      * split W1 into obs/action halves (eliminates the runtime concat),
      * zero-pad the hidden dim up to 128 (never beyond — see review),
        padded bias columns are zero so ReLU(0)=0 and no leakage into layer 3,
      * store MXU weights (w1_obs / w1_act / w2) in bf16 (f32 accumulation in
        the kernel),
      * store W3 transposed as a (1, Hp) f32 row (used on VPU/XLU, not MXU),
        b3 as a (1, 1) SMEM scalar.
    """
    H = params["w1"].shape[1]
    Hp = max(lane, pl.cdiv(H, lane) * lane)
    pad_cols = lambda a: jnp.pad(a, ((0, 0), (0, Hp - H)))

    w1 = params["w1"]
    return dict(
        w1_obs=pad_cols(w1[:num_inputs]).astype(jnp.bfloat16),
        w1_act=pad_cols(w1[num_inputs:]).astype(jnp.bfloat16),
        b1=pad_cols(params["b1"]),
        w2=jnp.pad(params["w2"], ((0, Hp - H), (0, Hp - H))).astype(jnp.bfloat16),
        b2=pad_cols(params["b2"]),
        w3_row=pad_cols(params["w3"].T),
        b3=params["b3"].reshape(1, 1),
    )


def _reference(inputs, actions, p):
    x = jnp.concatenate([inputs, actions], axis=-1)
    h1 = jnp.maximum(x @ p["w1"] + p["b1"], 0.0)
    h2 = jnp.maximum(h1 @ p["w2"] + p["b2"], 0.0)
    return h2 @ p["w3"] + p["b3"]


if __name__ == "__main__":
    # Small shapes consistent with a HalfCheetah-ish critic: obs=17, act=6.
    B, NUM_INPUTS, NUM_ACTIONS, HIDDEN = 8, 17, 6, 32

    key = jax.random.PRNGKey(0)
    k_obs, k_act, k_par = jax.random.split(key, 3)
    inputs = jax.random.normal(k_obs, (B, NUM_INPUTS), jnp.float32)
    actions = jax.random.normal(k_act, (B, NUM_ACTIONS), jnp.float32)

    raw_params = init_params(k_par, NUM_INPUTS, NUM_ACTIONS, HIDDEN)
    params = prepare_params(raw_params, NUM_INPUTS, NUM_ACTIONS)

    # Single-tile path.
    q = critic_forward(inputs, actions, params)
    q = jax.block_until_ready(q)
    q_ref = _reference(inputs, actions, raw_params)
    assert q.shape == (B, 1), q.shape
    # bf16 MXU operands (f32 accumulation) -> loosened tolerance vs f32 reference.
    assert jnp.allclose(q, q_ref, atol=5e-2, rtol=5e-2), "mismatch vs reference"

    # Multi-step grid path (exercises the pipeline with a small forced tile).
    B2 = 40
    k_obs2, k_act2 = jax.random.split(jax.random.PRNGKey(1), 2)
    inputs2 = jax.random.normal(k_obs2, (B2, NUM_INPUTS), jnp.float32)
    actions2 = jax.random.normal(k_act2, (B2, NUM_ACTIONS), jnp.float32)
    q2 = jax.block_until_ready(critic_forward(inputs2, actions2, params, batch_tile=16))
    q2_ref = _reference(inputs2, actions2, raw_params)
    assert q2.shape == (B2, 1), q2.shape
    assert jnp.allclose(q2, q2_ref, atol=5e-2, rtol=5e-2), "mismatch vs reference (tiled)"

    print("KERNEL_OK")
</pallas_src>

<mosaic_0001>
module attributes {stable_mosaic.version = 11 : i64} {
  func.func @_critic_kernel(%arg0: i32, %arg1: memref<8x17xf32, #tpu.memory_space<vmem>>, %arg2: memref<8x6xf32, #tpu.memory_space<vmem>>, %arg3: memref<17x128xbf16, #tpu.memory_space<vmem>>, %arg4: memref<6x128xbf16, #tpu.memory_space<vmem>>, %arg5: memref<1x128xf32, #tpu.memory_space<vmem>>, %arg6: memref<128x128xbf16, #tpu.memory_space<vmem>>, %arg7: memref<1x128xf32, #tpu.memory_space<vmem>>, %arg8: memref<1x128xf32, #tpu.memory_space<vmem>>, %arg9: memref<1x1xf32, #tpu.memory_space<smem>>, %arg10: memref<8x1xf32, #tpu.memory_space<vmem>>) attributes {dimension_semantics = [#tpu.dimension_semantics<parallel>], iteration_bounds = array<i64: 1>, scalar_prefetch = 0 : i64, scratch_operands = 0 : i64, tpu.core_type = #tpu.core_type<tc>, window_params = [{transform_indices = @transform_0, window_bounds = array<i64: 8, 17>}, {transform_indices = @transform_1, window_bounds = array<i64: 8, 6>}, {pipeline_mode = #tpu.pipeline_mode<synchronous>, transform_indices = @transform_2, window_bounds = array<i64: 17, 128>}, {pipeline_mode = #tpu.pipeline_mode<synchronous>, transform_indices = @transform_3, window_bounds = array<i64: 6, 128>}, {pipeline_mode = #tpu.pipeline_mode<synchronous>, transform_indices = @transform_4, window_bounds = array<i64: 1, 128>}, {pipeline_mode = #tpu.pipeline_mode<synchronous>, transform_indices = @transform_5, window_bounds = array<i64: 128, 128>}, {pipeline_mode = #tpu.pipeline_mode<synchronous>, transform_indices = @transform_6, window_bounds = array<i64: 1, 128>}, {pipeline_mode = #tpu.pipeline_mode<synchronous>, transform_indices = @transform_7, window_bounds = array<i64: 1, 128>}, {transform_indices = @transform_8, window_bounds = array<i64: 1, 1>}, {transform_indices = @transform_9, window_bounds = array<i64: 8, 1>}]} {
    %c0 = arith.constant 0 : index
    %c0_0 = arith.constant 0 : index
    %0 = vector.load %arg1[%c0, %c0_0] : memref<8x17xf32, #tpu.memory_space<vmem>>, vector<8x17xf32>
    %1 = arith.truncf %0 : vector<8x17xf32> to vector<8x17xbf16>
    %c0_1 = arith.constant 0 : index
    %c0_2 = arith.constant 0 : index
    %2 = vector.load %arg2[%c0_1, %c0_2] : memref<8x6xf32, #tpu.memory_space<vmem>>, vector<8x6xf32>
    %3 = arith.truncf %2 : vector<8x6xf32> to vector<8x6xbf16>
    %c0_3 = arith.constant 0 : index
    %c0_4 = arith.constant 0 : index
    %4 = vector.load %arg3[%c0_3, %c0_4] : memref<17x128xbf16, #tpu.memory_space<vmem>>, vector<17x128xbf16>
    %cst = arith.constant dense<0.000000e+00> : vector<8x128xf32>
    %5 = tpu.matmul %1, %4, %cst {dimension_numbers = #tpu.dot_dimension_numbers<[1], [0], [0], [1], [0, 0, 1, 1], [], []>} : vector<8x17xbf16>, vector<17x128xbf16>, vector<8x128xf32> -> vector<8x128xf32>
    %c0_5 = arith.constant 0 : index
    %c0_6 = arith.constant 0 : index
    %6 = vector.load %arg4[%c0_5, %c0_6] : memref<6x128xbf16, #tpu.memory_space<vmem>>, vector<6x128xbf16>
    %cst_7 = arith.constant dense<0.000000e+00> : vector<8x128xf32>
    %7 = tpu.matmul %3, %6, %cst_7 {dimension_numbers = #tpu.dot_dimension_numbers<[1], [0], [0], [1], [0, 0, 1, 1], [], []>} : vector<8x6xbf16>, vector<6x128xbf16>, vector<8x128xf32> -> vector<8x128xf32>
    %8 = arith.addf %5, %7 : vector<8x128xf32>
    %c0_8 = arith.constant 0 : index
    %c0_9 = arith.constant 0 : index
    %9 = vector.load %arg5[%c0_8, %c0_9] : memref<1x128xf32, #tpu.memory_space<vmem>>, vector<1x128xf32>
    %10 = vector.broadcast %9 : vector<1x128xf32> to vector<8x128xf32>
    %11 = arith.addf %8, %10 : vector<8x128xf32>
    %cst_10 = arith.constant 0.000000e+00 : f32
    %12 = vector.broadcast %cst_10 : f32 to vector<8x128xf32>
    %13 = arith.maximumf %11, %12 : vector<8x128xf32>
    %14 = arith.truncf %13 : vector<8x128xf32> to vector<8x128xbf16>
    %c0_11 = arith.constant 0 : index
    %c0_12 = arith.constant 0 : index
    %15 = vector.load %arg6[%c0_11, %c0_12] : memref<128x128xbf16, #tpu.memory_space<vmem>>, vector<128x128xbf16>
    %cst_13 = arith.constant dense<0.000000e+00> : vector<8x128xf32>
    %16 = tpu.matmul %14, %15, %cst_13 {dimension_numbers = #tpu.dot_dimension_numbers<[1], [0], [0], [1], [0, 0, 1, 1], [], []>} : vector<8x128xbf16>, vector<128x128xbf16>, vector<8x128xf32> -> vector<8x128xf32>
    %c0_14 = arith.constant 0 : index
    %c0_15 = arith.constant 0 : index
    %17 = vector.load %arg7[%c0_14, %c0_15] : memref<1x128xf32, #tpu.memory_space<vmem>>, vector<1x128xf32>
    %18 = vector.broadcast %17 : vector<1x128xf32> to vector<8x128xf32>
    %19 = arith.addf %16, %18 : vector<8x128xf32>
    %cst_16 = arith.constant 0.000000e+00 : f32
    %20 = vector.broadcast %cst_16 : f32 to vector<8x128xf32>
    %21 = arith.maximumf %19, %20 : vector<8x128xf32>
    %c0_17 = arith.constant 0 : index
    %c0_18 = arith.constant 0 : index
    %22 = vector.load %arg8[%c0_17, %c0_18] : memref<1x128xf32, #tpu.memory_space<vmem>>, vector<1x128xf32>
    %23 = vector.broadcast %22 : vector<1x128xf32> to vector<8x128xf32>
    %24 = arith.mulf %21, %23 : vector<8x128xf32>
    %cst_19 = arith.constant dense<0.000000e+00> : vector<8xf32>
    %25 = vector.multi_reduction <add>, %24, %cst_19 [1] : vector<8x128xf32> to vector<8xf32>
    %26 = vector.shape_cast %25 : vector<8xf32> to vector<8x1xf32>
    %c0_20 = arith.constant 0 : index
    %c0_21 = arith.constant 0 : index
    %27 = memref.load %arg9[%c0_20, %c0_21] : memref<1x1xf32, #tpu.memory_space<smem>>
    %28 = vector.broadcast %27 : f32 to vector<8x1xf32>
    %29 = arith.addf %26, %28 : vector<8x1xf32>
    %c0_22 = arith.constant 0 : index
    %c0_23 = arith.constant 0 : index
    %30 = vector.load %arg10[%c0_22, %c0_23] : memref<8x1xf32, #tpu.memory_space<vmem>>, vector<8x1xf32>
    tpu.vector_store %arg10[%c0_22, %c0_23], %29 {strides = array<i32>} : memref<8x1xf32, #tpu.memory_space<vmem>>, vector<8x1xf32>,
    return
  }
  func.func @transform_0(%arg0: i32) -> (i32, i32) {
    %c0_i32 = arith.constant 0 : i32
    %c0_i32_0 = arith.constant 0 : i32
    return %arg0, %c0_i32 : i32, i32
  }
  func.func @transform_1(%arg0: i32) -> (i32, i32) {
    %c0_i32 = arith.constant 0 : i32
    %c0_i32_0 = arith.constant 0 : i32
    return %arg0, %c0_i32 : i32, i32
  }
  func.func @transform_2(%arg0: i32) -> (i32, i32) {
    %c0_i32 = arith.constant 0 : i32
    %c0_i32_0 = arith.constant 0 : i32
    %c0_i32_1 = arith.constant 0 : i32
    return %c0_i32, %c0_i32_0 : i32, i32
  }
  func.func @transform_3(%arg0: i32) -> (i32, i32) {
    %c0_i32 = arith.constant 0 : i32
    %c0_i32_0 = arith.constant 0 : i32
    %c0_i32_1 = arith.constant 0 : i32
    return %c0_i32, %c0_i32_0 : i32, i32
  }
  func.func @transform_4(%arg0: i32) -> (i32, i32) {
    %c0_i32 = arith.constant 0 : i32
    %c0_i32_0 = arith.constant 0 : i32
    %c0_i32_1 = arith.constant 0 : i32
    return %c0_i32, %c0_i32_0 : i32, i32
  }
  func.func @transform_5(%arg0: i32) -> (i32, i32) {
    %c0_i32 = arith.constant 0 : i32
    %c0_i32_0 = arith.constant 0 : i32
    %c0_i32_1 = arith.constant 0 : i32
    return %c0_i32, %c0_i32_0 : i32, i32
  }
  func.func @transform_6(%arg0: i32) -> (i32, i32) {
    %c0_i32 = arith.constant 0 : i32
    %c0_i32_0 = arith.constant 0 : i32
    %c0_i32_1 = arith.constant 0 : i32
    return %c0_i32, %c0_i32_0 : i32, i32
  }
  func.func @transform_7(%arg0: i32) -> (i32, i32) {
    %c0_i32 = arith.constant 0 : i32
    %c0_i32_0 = arith.constant 0 : i32
    %c0_i32_1 = arith.constant 0 : i32
    return %c0_i32, %c0_i32_0 : i32, i32
  }
  func.func @transform_8(%arg0: i32) -> (i32, i32) {
    %c0_i32 = arith.constant 0 : i32
    %c0_i32_0 = arith.constant 0 : i32
    %c0_i32_1 = arith.constant 0 : i32
    return %c0_i32, %c0_i32_0 : i32, i32
  }
  func.func @transform_9(%arg0: i32) -> (i32, i32) {
    %c0_i32 = arith.constant 0 : i32
    %c0_i32_0 = arith.constant 0 : i32
    return %arg0, %c0_i32 : i32, i32
  }
}

</mosaic_0001>

<llo_original>
// kernel: tpu_custom_call.1
$region0: #{tpu_custom_call.1}
  #allocation0 [shape = 'u32[]', space=smem, size = 0x4, offset = 0x4, fixed_abs, tag = 'smem constant byte address 0x4 - core index']
  #allocation1 [shape = 'u32[144,128]{1,0:T(1,128)}', space=vmem, size = 0x12000, scoped, tag = 'internal scratch']
  #allocation2 [shape = 'f32[1,1]{1,0:T(1,128)S(6)}', space=smem, size = 0x200, scoped, tag = 'scoped memory for tpu_custom_call.1']
  %s0 = inlined_call_operand.hbm [shape: f32[8,17], index: 0, kind: input, shape index: {}]
  %s1 = inlined_call_operand.hbm [shape: f32[8,6], index: 1, kind: input, shape index: {}]
  %s2 = inlined_call_operand.hbm [shape: bf16[17,128], index: 2, kind: input, shape index: {}]
  %s3 = inlined_call_operand.vmem [shape: bf16[6,128], index: 3, kind: input, shape index: {}]
  %s4 = inlined_call_operand.vmem [shape: f32[1,128], index: 4, kind: input, shape index: {}]
  %s5 = inlined_call_operand.hbm [shape: bf16[128,128], index: 5, kind: input, shape index: {}]
  %s6 = inlined_call_operand.vmem [shape: f32[1,128], index: 6, kind: input, shape index: {}]
  %s7 = inlined_call_operand.vmem [shape: f32[1,128], index: 7, kind: input, shape index: {}]
  %s8 = inlined_call_operand.<no memory space> [shape: f32[1,1], index: 8, kind: input, shape index: {}]
  %s9 = inlined_call_operand.vmem [shape: f32[8,1], index: 9, kind: output, shape index: {}]
  %s10 = sld [smem:[#allocation0]]
  $region62: #{tpu_custom_call.1} parent=0
    _
  %s12 = ssub.s32 1, %s10
  %s13 = scalar_select 0, %s12, %s10
  %14 = sst [smem:[#allocation2]] %s8
  $region1: #{tpu_custom_call.1} parent=0
    #allocation3 [shape = 'u8[4096]{0}', space=vmem, size = 0x1000, scoped, tag = 'input window, operand 0, single buffered']
    #allocation4 [shape = 's32[1]{0}', space=sflag, size = 0x4, scoped, tag = 'scoped memory for tpu_custom_call.1']
    #allocation5 [shape = 'u8[4096]{0}', space=vmem, size = 0x1000, scoped, tag = 'input window, operand 1, single buffered']
    #allocation6 [shape = 's32[1]{0}', space=sflag, size = 0x4, scoped, tag = 'scoped memory for tpu_custom_call.1']
    #allocation7 [shape = 'u8[6144]{0}', space=vmem, size = 0x1800, scoped, tag = 'input window, operand 2, single buffered']
    #allocation8 [shape = 'u8[32768]{0}', space=vmem, size = 0x8000, scoped, tag = 'input window, operand 5, single buffered']
    #allocation9 [shape = 's32[1]{0}', space=sflag, size = 0x4, scoped, tag = 'scoped memory for tpu_custom_call.1']
    %15 = vsyncpa [#allocation4], 0
    %16 = vsyncpa [#allocation6], 0
    %17 = vsyncpa [#allocation9], 0
    // Predicated region
    $region2: #{tpu_custom_call.1} parent=1 // pred_check
      _
    $region3: #{tpu_custom_call.1} parent=1 // pred_check_branch
      %19 = sbr.rel (0) target = $region5
    $region4: #{tpu_custom_call.1} parent=1 // pred_region
      %s21 = ssub.s32 128, 128
      %22 = vsyncadd [#allocation4], %s21
      %s24 = sshll.u32 [#allocation3], 4
      %s25 = int_to_ptr.vmem [resolvable:$true] %s24
      %27 = dma.hbm_to_vmem [thread:$0]  %s0, 128, %s25, [#allocation4]
    $region5: #{tpu_custom_call.1} parent=1 // pred_fallthru
      _
    // Predicated region
    $region6: #{tpu_custom_call.1} parent=1 // pred_check
      _
    $region7: #{tpu_custom_call.1} parent=1 // pred_check_branch
      %29 = sbr.rel (0) target = $region9
    $region8: #{tpu_custom_call.1} parent=1 // pred_region
      %s31 = ssub.s32 128, 128
      %32 = vsyncadd [#allocation6], %s31
      %s34 = sshll.u32 [#allocation5], 4
      %s35 = int_to_ptr.vmem [resolvable:$true] %s34
      %37 = dma.hbm_to_vmem [thread:$0]  %s1, 128, %s35, [#allocation6]
    $region9: #{tpu_custom_call.1} parent=1 // pred_fallthru
      _
    // Predicated region
    $region10: #{tpu_custom_call.1} parent=1 // pred_check
      _
    $region11: #{tpu_custom_call.1} parent=1 // pred_check_branch
      %39 = sbr.rel (0) target = $region13
    $region12: #{tpu_custom_call.1} parent=1 // pred_region
      %s41 = ssub.s32 192, 192
      %42 = vsyncadd [#allocation6], %s41
      %s43 = sshll.u32 [#allocation7], 4
      %s44 = int_to_ptr.vmem [resolvable:$true] %s43
      %49 = dma.hbm_to_vmem [thread:$0]  %s2, 192, %s44, [#allocation6], 64, 64, 4
    $region13: #{tpu_custom_call.1} parent=1 // pred_fallthru
      _
    // Predicated region
    $region14: #{tpu_custom_call.1} parent=1 // pred_check
      _
    $region15: #{tpu_custom_call.1} parent=1 // pred_check_branch
      %51 = sbr.rel (0) target = $region17
    $region16: #{tpu_custom_call.1} parent=1 // pred_region
      _
    $region17: #{tpu_custom_call.1} parent=1 // pred_fallthru
      _
    // Predicated region
    $region18: #{tpu_custom_call.1} parent=1 // pred_check
      _
    $region19: #{tpu_custom_call.1} parent=1 // pred_check_branch
      %53 = sbr.rel (0) target = $region21
    $region20: #{tpu_custom_call.1} parent=1 // pred_region
      _
    $region21: #{tpu_custom_call.1} parent=1 // pred_fallthru
      _
    // Predicated region
    $region22: #{tpu_custom_call.1} parent=1 // pred_check
      _
    $region23: #{tpu_custom_call.1} parent=1 // pred_check_branch
      %55 = sbr.rel (0) target = $region25
    $region24: #{tpu_custom_call.1} parent=1 // pred_region
      %s57 = ssub.s32 1024, 1024
      %58 = vsyncadd [#allocation9], %s57
      %s59 = sshll.u32 [#allocation8], 4
      %s60 = int_to_ptr.vmem [resolvable:$true] %s59
      %65 = dma.hbm_to_vmem [thread:$0]  %s5, 1024, %s60, [#allocation9], 64, 64, 4
    $region25: #{tpu_custom_call.1} parent=1 // pred_fallthru
      _
    // Predicated region
    $region26: #{tpu_custom_call.1} parent=1 // pred_check
      _
    $region27: #{tpu_custom_call.1} parent=1 // pred_check_branch
      %67 = sbr.rel (0) target = $region29
    $region28: #{tpu_custom_call.1} parent=1 // pred_region
      _
    $region29: #{tpu_custom_call.1} parent=1 // pred_fallthru
      _
    // Predicated region
    $region30: #{tpu_custom_call.1} parent=1 // pred_check
      _
    $region31: #{tpu_custom_call.1} parent=1 // pred_check_branch
      %69 = sbr.rel (0) target = $region33
    $region32: #{tpu_custom_call.1} parent=1 // pred_region
      _
    $region33: #{tpu_custom_call.1} parent=1 // pred_fallthru
      _
    // Predicated region
    $region34: #{tpu_custom_call.1} parent=1 // pred_check
      _
    $region35: #{tpu_custom_call.1} parent=1 // pred_check_branch
      %71 = sbr.rel (0) target = $region37
    $region36: #{tpu_custom_call.1} parent=1 // pred_region
      _
    $region37: #{tpu_custom_call.1} parent=1 // pred_fallthru
      _
    // Predicated region
    $region38: #{tpu_custom_call.1} parent=1 // pred_check
      _
    $region39: #{tpu_custom_call.1} parent=1 // pred_check_branch
      %73 = sbr.rel (0) target = $region41
    $region40: #{tpu_custom_call.1} parent=1 // pred_region
      %74 = dma.done [#allocation4], 128
    $region41: #{tpu_custom_call.1} parent=1 // pred_fallthru
      _
    // Predicated region
    $region42: #{tpu_custom_call.1} parent=1 // pred_check
      _
    $region43: #{tpu_custom_call.1} parent=1 // pred_check_branch
      %76 = sbr.rel (0) target = $region45
    $region44: #{tpu_custom_call.1} parent=1 // pred_region
      %77 = dma.done [#allocation6], 128
    $region45: #{tpu_custom_call.1} parent=1 // pred_fallthru
      _
    // Predicated region
    $region46: #{tpu_custom_call.1} parent=1 // pred_check
      _
    $region47: #{tpu_custom_call.1} parent=1 // pred_check_branch
      %79 = sbr.rel (0) target = $region49
    $region48: #{tpu_custom_call.1} parent=1 // pred_region
      %80 = dma.done [#allocation6], 192
    $region49: #{tpu_custom_call.1} parent=1 // pred_fallthru
      _
    // Predicated region
    $region50: #{tpu_custom_call.1} parent=1 // pred_check
      _
    $region51: #{tpu_custom_call.1} parent=1 // pred_check_branch
      %82 = sbr.rel (0) target = $region53
    $region52: #{tpu_custom_call.1} parent=1 // pred_region
      %83 = dma.done [#allocation9], 1024
    $region53: #{tpu_custom_call.1} parent=1 // pred_fallthru
      _
    %v85 = vld [vmem:[#allocation3] sm:$0xff]
    %v86 = vpack.c.bf16 %v85, %v85
    %v87 = vld [vmem:[#allocation5] sm:$0xff]
    %v88 = vpack.c.bf16 %v87, %v87
    %v89 = vld [vmem:[#allocation7] sm:$0xf]
    %v90 = vld [vmem:[#allocation7 + $0x4] sm:$0xf]
    %v91 = vld [vmem:[#allocation7 + $0x8] sm:$0x1]
    %v92 = vld [vmem:[%s3] sm:$0x7]
    %vm93 = vcmask 48128
    %v95 = vsel %vm93, %v88, 0
    %vm97 = vcmask 1042432
    %v99 = vsel %vm97, %v92, 0
    %101 = vmatprep.subr.bf16.mxu0 0
    %102 = vmatpush1.bf16.msra.mxu0 %v99
    %103 = vmatprep.subr.bf16.mxu0 0
    %104 = vmatpush1.bf16.msra.mxu0 0
    %105 = vmatprep.subr.bf16.mxu0 0
    %106 = vmatpush1.bf16.msra.mxu0 0
    %107 = vmatprep.subr.bf16.mxu0 0
    %108 = vmatpush1.bf16.msra.mxu0 0
    %109 = vmatprep.subr.bf16.mxu0 0
    %110 = vmatpush1.bf16.msra.mxu0 0
    %111 = vmatprep.subr.bf16.mxu0 0
    %112 = vmatpush1.bf16.msra.mxu0 0
    %113 = vmatprep.subr.bf16.mxu0 0
    %114 = vmatpush1.bf16.msra.mxu0 0
    %115 = vmatprep.subr.bf16.mxu0 0
    %116 = vmatpush1.bf16.msra.mxu0 0
    %117 = vmatprep.subr.bf16.mxu0 0
    %118 = vmatpush1.bf16.msra.mxu0 0
    %119 = vmatprep.subr.bf16.mxu0 0
    %120 = vmatpush1.bf16.msra.mxu0 0
    %121 = vmatprep.subr.bf16.mxu0 0
    %122 = vmatpush1.bf16.msra.mxu0 0
    %123 = vmatprep.subr.bf16.mxu0 0
    %124 = vmatpush1.bf16.msra.mxu0 0
    %125 = vmatprep.subr.bf16.mxu0 0
    %126 = vmatpush1.bf16.msra.mxu0 0
    %127 = vmatprep.subr.bf16.mxu0 0
    %128 = vmatpush1.bf16.msra.mxu0 0
    %129 = vmatprep.subr.bf16.mxu0 0
    %130 = vmatpush1.bf16.msra.mxu0 0
    %131 = vmatprep.subr.bf16.mxu0 0
    %132 = vmatpush1.bf16.msra.mxu0 0
    %133 = vmatprep.mubr.bf16.mxu0 0
    %134 = vmatmul.mubr.bf16.gmra.mrb[0].mxu0 %v95
    %v135 = vpop.f32.mrb[0].mxu0
    %v136 = vadd.f32 0.0, %v135
    %v137 = vpop.f32.mrb[0].mxu0
    %v138 = vpop.f32.mrb[0].mxu0
    %v139 = vpop.f32.mrb[0].mxu0
    %140 = vdwg.mxu0
    %v144 = vunpack.c.l.b16 %v89
    %v145 = vunpack.c.l.b16 %v90
    %v146 = vunpack.c.l.b16 %v91
    %v147 = vpack.c.b16 %v145, %v144
    %v148 = vpack.c.b16 %v146, %v146
    %vm150 = vcmask 138240
    %v152 = vsel %vm150, %v86, 0
    %vm154 = vcmask 1040384
    %v155 = vsel 0, 4294967295, 65535
    %v156 = vsel %vm154, %v155, 0
    %v158 = vand.u32 %v148, %v156
    %160 = vmatprep.subr.bf16.mxu0 0
    %161 = vmatpush1.bf16.msra.mxu0 %v147
    %162 = vmatprep.subr.bf16.mxu0 0
    %163 = vmatpush1.bf16.msra.mxu0 %v158
    %164 = vmatprep.subr.bf16.mxu0 0
    %165 = vmatpush1.bf16.msra.mxu0 0
    %166 = vmatprep.subr.bf16.mxu0 0
    %167 = vmatpush1.bf16.msra.mxu0 0
    %168 = vmatprep.subr.bf16.mxu0 0
    %169 = vmatpush1.bf16.msra.mxu0 0
    %170 = vmatprep.subr.bf16.mxu0 0
    %171 = vmatpush1.bf16.msra.mxu0 0
    %172 = vmatprep.subr.bf16.mxu0 0
    %173 = vmatpush1.bf16.msra.mxu0 0
    %174 = vmatprep.subr.bf16.mxu0 0
    %175 = vmatpush1.bf16.msra.mxu0 0
    %176 = vmatprep.subr.bf16.mxu0 0
    %177 = vmatpush1.bf16.msra.mxu0 0
    %178 = vmatprep.subr.bf16.mxu0 0
    %179 = vmatpush1.bf16.msra.mxu0 0
    %180 = vmatprep.subr.bf16.mxu0 0
    %181 = vmatpush1.bf16.msra.mxu0 0
    %182 = vmatprep.subr.bf16.mxu0 0
    %183 = vmatpush1.bf16.msra.mxu0 0
    %184 = vmatprep.subr.bf16.mxu0 0
    %185 = vmatpush1.bf16.msra.mxu0 0
    %186 = vmatprep.subr.bf16.mxu0 0
    %187 = vmatpush1.bf16.msra.mxu0 0
    %188 = vmatprep.subr.bf16.mxu0 0
    %189 = vmatpush1.bf16.msra.mxu0 0
    %190 = vmatprep.subr.bf16.mxu0 0
    %191 = vmatpush1.bf16.msra.mxu0 0
    %192 = vmatprep.mubr.bf16.mxu0 0
    %193 = vmatmul.mubr.bf16.gmra.mrb[0].mxu0 %v152
    %v194 = vpop.f32.mrb[0].mxu0
    %v195 = vadd.f32 %v136, %v194
    %v196 = vpop.f32.mrb[0].mxu0
    %v197 = vpop.f32.mrb[0].mxu0
    %v198 = vpop.f32.mrb[0].mxu0
    %199 = vdwg.mxu0
    %v200 = vld [vmem:[%s4] sm:$0x1]
    %v202 = vlaneseq
    %v203 = vshrl.u32 %v202, 7
    %v204 = vsub.s32 0, %v203
    %v205 = vrot.slane %v200, %v204
    %v207 = vadd.f32 %v195, %v205
    %v208 = vmax.f32 %v207, 0.0
    %v209 = vpack.c.bf16 %v208, %v208
    %v210 = vld [vmem:[#allocation8] sm:$0xf]
    %v211 = vld [vmem:[#allocation8 + $0x4] sm:$0xf]
    %v212 = vld [vmem:[#allocation8 + $0x8] sm:$0xf]
    %v213 = vld [vmem:[#allocation8 + $0xc] sm:$0xf]
    %v214 = vld [vmem:[#allocation8 + $0x10] sm:$0xf]
    %v215 = vld [vmem:[#allocation8 + $0x14] sm:$0xf]
    %v216 = vld [vmem:[#allocation8 + $0x18] sm:$0xf]
    %v217 = vld [vmem:[#allocation8 + $0x1c] sm:$0xf]
    %v218 = vld [vmem:[#allocation8 + $0x20] sm:$0xf]
    %v219 = vld [vmem:[#allocation8 + $0x24] sm:$0xf]
    %v220 = vld [vmem:[#allocation8 + $0x28] sm:$0xf]
    %v221 = vld [vmem:[#allocation8 + $0x2c] sm:$0xf]
    %v222 = vld [vmem:[#allocation8 + $0x30] sm:$0xf]
    %v223 = vld [vmem:[#allocation8 + $0x34] sm:$0xf]
    %v224 = vld [vmem:[#allocation8 + $0x38] sm:$0xf]
    %v225 = vld [vmem:[#allocation8 + $0x3c] sm:$0xf]
    %v226 = vld [vmem:[%s6] sm:$0x1]
    %v228 = vlaneseq
    %v229 = vshrl.u32 %v228, 7
    %v230 = vsub.s32 0, %v229
    %v231 = vrot.slane %v226, %v230
    %v249 = vunpack.c.l.b16 %v210
    %v250 = vunpack.c.l.b16 %v211
    %v251 = vunpack.c.l.b16 %v212
    %v252 = vunpack.c.l.b16 %v213
    %v253 = vunpack.c.l.b16 %v214
    %v254 = vunpack.c.l.b16 %v215
    %v255 = vunpack.c.l.b16 %v216
    %v256 = vunpack.c.l.b16 %v217
    %v257 = vunpack.c.l.b16 %v218
    %v258 = vunpack.c.l.b16 %v219
    %v259 = vunpack.c.l.b16 %v220
    %v260 = vunpack.c.l.b16 %v221
    %v261 = vunpack.c.l.b16 %v222
    %v262 = vunpack.c.l.b16 %v223
    %v263 = vunpack.c.l.b16 %v224
    %v264 = vunpack.c.l.b16 %v225
    %v265 = vpack.c.b16 %v250, %v249
    %v266 = vpack.c.b16 %v252, %v251
    %v267 = vpack.c.b16 %v254, %v253
    %v268 = vpack.c.b16 %v256, %v255
    %v269 = vpack.c.b16 %v258, %v257
    %v270 = vpack.c.b16 %v260, %v259
    %v271 = vpack.c.b16 %v262, %v261
    %v272 = vpack.c.b16 %v264, %v263
    %281 = vmatprep.subr.bf16.mxu0 0
    %282 = vmatpush1.bf16.msra.mxu0 %v265
    %283 = vmatprep.subr.bf16.mxu0 0
    %284 = vmatpush1.bf16.msra.mxu0 %v266
    %285 = vmatprep.subr.bf16.mxu0 0
    %286 = vmatpush1.bf16.msra.mxu0 %v267
    %287 = vmatprep.subr.bf16.mxu0 0
    %288 = vmatpush1.bf16.msra.mxu0 %v268
    %289 = vmatprep.subr.bf16.mxu0 0
    %290 = vmatpush1.bf16.msra.mxu0 %v269
    %291 = vmatprep.subr.bf16.mxu0 0
    %292 = vmatpush1.bf16.msra.mxu0 %v270
    %293 = vmatprep.subr.bf16.mxu0 0
    %294 = vmatpush1.bf16.msra.mxu0 %v271
    %295 = vmatprep.subr.bf16.mxu0 0
    %296 = vmatpush1.bf16.msra.mxu0 %v272
    %297 = vmatprep.subr.bf16.mxu0 0
    %298 = vmatpush1.bf16.msra.mxu0 0
    %299 = vmatprep.subr.bf16.mxu0 0
    %300 = vmatpush1.bf16.msra.mxu0 0
    %301 = vmatprep.subr.bf16.mxu0 0
    %302 = vmatpush1.bf16.msra.mxu0 0
    %303 = vmatprep.subr.bf16.mxu0 0
    %304 = vmatpush1.bf16.msra.mxu0 0
    %305 = vmatprep.subr.bf16.mxu0 0
    %306 = vmatpush1.bf16.msra.mxu0 0
    %307 = vmatprep.subr.bf16.mxu0 0
    %308 = vmatpush1.bf16.msra.mxu0 0
    %309 = vmatprep.subr.bf16.mxu0 0
    %310 = vmatpush1.bf16.msra.mxu0 0
    %311 = vmatprep.subr.bf16.mxu0 0
    %312 = vmatpush1.bf16.msra.mxu0 0
    %313 = vmatprep.mubr.bf16.mxu0 0
    %314 = vmatmul.mubr.bf16.gmra.mrb[0].mxu0 %v209
    %v315 = vpop.f32.mrb[0].mxu0
    %v316 = vadd.f32 %v231, %v315
    %v317 = vpop.f32.mrb[0].mxu0
    %v318 = vpop.f32.mrb[0].mxu0
    %v319 = vpop.f32.mrb[0].mxu0
    %320 = vdwg.mxu0
    %v321 = vmax.f32 %v316, 0.0
    %v322 = vld [vmem:[%s7] sm:$0x1]
    %v324 = vlaneseq
    %v325 = vshrl.u32 %v324, 7
    %v326 = vsub.s32 0, %v325
    %v327 = vrot.slane %v322, %v326
    %v329 = vmul.f32 %v321, %v327
    %330 = vadd.xlane.f32.xlu0 %v329
    %v331 = vpop.xlane.xlu0 %330
    %s332 = sld [smem:[#allocation2]]
    %v333 = vstv %s332
    %v334 = vadd.f32 %v331, %v333
    %vm335 = vcmask 7168
    %336 = vst.msk [vmem:[%s9] sm:$0xff] %vm335, %v334
    // Predicated region
    $region54: #{tpu_custom_call.1} parent=1 // pred_check
      _
    $region55: #{tpu_custom_call.1} parent=1 // pred_check_branch
      %338 = sbr.rel (0) target = $region57
    $region56: #{tpu_custom_call.1} parent=1 // pred_region
      _
    $region57: #{tpu_custom_call.1} parent=1 // pred_fallthru
      _
    // Predicated region
    $region58: #{tpu_custom_call.1} parent=1 // pred_check
      _
    $region59: #{tpu_custom_call.1} parent=1 // pred_check_branch
      %340 = sbr.rel (0) target = $region61
    $region60: #{tpu_custom_call.1} parent=1 // pred_region
      _
    $region61: #{tpu_custom_call.1} parent=1 // pred_fallthru
      _
    %341 = vsyncpa [#allocation4], 1
    %342 = vsyncpa [#allocation6], 1
    %343 = vsyncpa [#allocation9], 1

</llo_original>
